<compile_context>
chip_gen: v7x
topology: tpu7x:2x2x1
jax: 0.10.0
libtpu: 0.0.40
codegen_flags: <defaults>
</compile_context>

<pallas_src>
import jax
import jax.numpy as jnp
from jax.experimental import pallas as pl
from jax.experimental.pallas import tpu as pltpu


def _round_up(x, m):
    return ((x + m - 1) // m) * m


# ----------------------------------------------------------------------------
# Pallas kernel: fused dendrites -> somas -> classifier MLP (one batch tile)
# ----------------------------------------------------------------------------
def _dann_kernel(x_ref, w1_ref, b1_ref, w2_ref, b2_ref, w3_ref, b3_ref, out_ref):
    # x arrives as f32; cast to bf16 on the VPU (hides under the input DMA).
    x = x_ref[...].astype(jnp.bfloat16)
    # dendrites (bf16 MXU, f32 accumulate) + f32 bias/ReLU
    h1 = jnp.dot(x, w1_ref[...], preferred_element_type=jnp.float32)
    h1 = jnp.maximum(h1 + b1_ref[...], 0.0)
    # somas
    h2 = jnp.dot(h1.astype(jnp.bfloat16), w2_ref[...],
                 preferred_element_type=jnp.float32)
    h2 = jnp.maximum(h2 + b2_ref[...], 0.0)
    # classifier (lane-dense 128-wide padded output, no activation)
    logits = jnp.dot(h2.astype(jnp.bfloat16), w3_ref[...],
                     preferred_element_type=jnp.float32)
    out_ref[...] = (logits + b3_ref[...]).astype(out_ref.dtype)


def dann_forward(x, params, num_out, *, block_b=1024):
    """x: (B, H, W) float32. Returns logits (B, num_out) float32."""
    B = x.shape[0]
    x2d = x.reshape(B, -1)                        # flatten(start_dim=1), stays f32
    w1, b1, w2, b2, w3, b3 = params               # w*: bf16 (padded), b*: f32 (padded)
    n_pix, nd = w1.shape
    ns = w2.shape[1]
    no_pad = w3.shape[1]                          # padded to a multiple of 128

    # Batch tile: multiple of 8 sublanes; aim for >= 2 grid steps so the
    # "parallel" axis shards across both TensorCores on v7x (extra grid step
    # is ~0.35 us on single-TC v5e/v6e -- negligible at these tile sizes).
    tm = min(block_b, max(8, _round_up(pl.cdiv(B, 2), 8)))
    grid = (pl.cdiv(B, tm),)                      # ragged last block, no x pad

    const = lambda i: (0, 0)                      # weights/biases stay VMEM-resident

    flops = 2 * B * (n_pix * nd + nd * ns + ns * no_pad)
    bytes_accessed = (
        x2d.size * 4
        + (w1.size + w2.size + w3.size) * 2
        + (b1.size + b2.size + b3.size) * 4
        + B * no_pad * 2
    )

    # Per-step VMEM footprint (double-buffered x/out + resident params); only
    # override the scoped-VMEM default when a big tile actually needs it
    # (matters for v5e's 16 MiB scoped default at tm >~ 2048 with f32 x).
    params_bytes = ((w1.size + w2.size + w3.size) * 2
                    + (b1.size + b2.size + b3.size) * 4)
    vmem_est = 2 * (tm * n_pix * 4 + tm * no_pad * 2) + 2 * params_bytes
    vmem_limit = (int(min(vmem_est + (4 << 20), 64 << 20))
                  if vmem_est > (12 << 20) else None)

    out = pl.pallas_call(
        _dann_kernel,
        out_shape=jax.ShapeDtypeStruct((B, no_pad), jnp.bfloat16),
        grid=grid,
        in_specs=[
            pl.BlockSpec((tm, n_pix), lambda i: (i, 0)),      # x: tiled over batch
            pl.BlockSpec((n_pix, nd), const),                 # w_dend
            pl.BlockSpec((1, nd), const),                     # b_dend
            pl.BlockSpec((nd, ns), const),                    # w_soma
            pl.BlockSpec((1, ns), const),                     # b_soma
            pl.BlockSpec((ns, no_pad), const),                # w_cls (padded)
            pl.BlockSpec((1, no_pad), const),                 # b_cls (padded)
        ],
        out_specs=pl.BlockSpec((tm, no_pad), lambda i: (i, 0)),
        compiler_params=pltpu.CompilerParams(
            dimension_semantics=("parallel",),
            vmem_limit_bytes=vmem_limit),
        cost_estimate=pl.CostEstimate(
            flops=flops, transcendentals=0, bytes_accessed=bytes_accessed),
    )(x2d, w1, b1, w2, b2, w3, b3)

    # NOTE: padded columns carry exactly-zero logits (zero weight + zero bias);
    # they must be sliced (or masked) before any downstream argmax/softmax.
    return out[:, :num_out].astype(jnp.float32)


# ----------------------------------------------------------------------------
# Deterministic parameter / mask construction (mirrors dANN.__init__)
# ----------------------------------------------------------------------------
def _linear_init(key, fan_in, fan_out):
    """PyTorch nn.Linear default init: U(-1/sqrt(fan_in), 1/sqrt(fan_in))."""
    kw, kb = jax.random.split(key)
    bound = 1.0 / jnp.sqrt(jnp.float32(fan_in))
    # stored as (in, out) => equivalent to torch weight (out, in) transposed
    w = jax.random.uniform(kw, (fan_in, fan_out), jnp.float32, -bound, bound)
    b = jax.random.uniform(kb, (1, fan_out), jnp.float32, -bound, bound)
    return w, b


def make_rf_mask(image_size, num_dendrites):
    # TODO(synk): original rf_mask() source not provided; use a deterministic
    # receptive-field mask where each dendrite sees a contiguous pixel window.
    H, W = image_size
    n_pix = H * W
    win = max(1, n_pix // num_dendrites)
    d = jnp.arange(num_dendrites)[:, None]          # (num_dendrites, 1)
    p = jnp.arange(n_pix)[None, :]                  # (1, n_pix)
    start = (d * win) % n_pix
    mask = ((p >= start) & (p < start + win)).astype(jnp.float32)
    return mask                                     # (num_dendrites, n_pix)


def make_somatic_mask(num_dendrites, num_somas):
    # TODO(synk): original somatic_mask() source not provided; use a
    # deterministic block-diagonal mask (each soma owns a group of dendrites).
    per = max(1, num_dendrites // num_somas)
    s = jnp.arange(num_somas)[:, None]              # (num_somas, 1)
    d = jnp.arange(num_dendrites)[None, :]          # (1, num_dendrites)
    mask = ((d // per) == s).astype(jnp.float32)
    return mask                                     # (num_somas, num_dendrites)


def build_dann_params(key, image_size, num_dendrites, num_somas, num_out,
                      *, lane=128):
    H, W = image_size
    n_pix = H * W
    k1, k2, k3 = jax.random.split(key, 3)

    w_dend, b_dend = _linear_init(k1, n_pix, num_dendrites)       # (n_pix, nd)
    w_soma, b_soma = _linear_init(k2, num_dendrites, num_somas)   # (nd, ns)
    w_cls,  b_cls  = _linear_init(k3, num_somas, num_out)         # (ns, no)

    # Apply masks exactly like __init__: torch weight is (out,in) * mask; our
    # weights are (in,out), so transpose the masks before multiplying.
    rf = make_rf_mask(image_size, num_dendrites)                  # (nd, n_pix)
    so = make_somatic_mask(num_dendrites, num_somas)              # (ns, nd)
    w_dend = w_dend * rf.T
    w_soma = w_soma * so.T

    # Pad every feature dim to a lane-dense multiple of 128 with zero rows /
    # cols and zero bias entries. relu(0 + 0) == 0, so padded hidden units and
    # padded logits are exactly zero -> semantics preserved after the wrapper
    # slices back to num_out.
    nd_p = _round_up(num_dendrites, lane)
    ns_p = _round_up(num_somas, lane)
    no_p = _round_up(num_out, lane)

    w_dend = jnp.pad(w_dend, ((0, 0), (0, nd_p - num_dendrites)))
    b_dend = jnp.pad(b_dend, ((0, 0), (0, nd_p - num_dendrites)))
    w_soma = jnp.pad(w_soma, ((0, nd_p - num_dendrites), (0, ns_p - num_somas)))
    b_soma = jnp.pad(b_soma, ((0, 0), (0, ns_p - num_somas)))
    w_cls = jnp.pad(w_cls, ((0, ns_p - num_somas), (0, no_p - num_out)))
    b_cls = jnp.pad(b_cls, ((0, 0), (0, no_p - num_out)))

    # bf16 weights for the MXU; biases stay f32 (added post-accumulation).
    return (w_dend.astype(jnp.bfloat16), b_dend,
            w_soma.astype(jnp.bfloat16), b_soma,
            w_cls.astype(jnp.bfloat16), b_cls)


# ----------------------------------------------------------------------------
if __name__ == "__main__":
    key = jax.random.PRNGKey(0)
    k_params, k_x = jax.random.split(key)

    image_size = (16, 16)
    num_dendrites = 64
    num_somas = 16
    num_out = 10
    batch = 24          # exercises a multi-step grid AND a ragged last block

    params = build_dann_params(k_params, image_size, num_dendrites,
                               num_somas, num_out)
    x = jax.random.normal(k_x, (batch,) + image_size, jnp.float32)

    logits = dann_forward(x, params, num_out)
    logits = jax.block_until_ready(logits)

    # Pure-JAX reference using the identical padded bf16 weights / f32
    # accumulation / bf16 logits path, so only the Pallas plumbing is tested.
    w1, b1, w2, b2, w3, b3 = params
    x2d = x.reshape(batch, -1).astype(jnp.bfloat16)
    h1 = jnp.maximum(
        jnp.dot(x2d, w1, preferred_element_type=jnp.float32) + b1, 0.0)
    h2 = jnp.maximum(
        jnp.dot(h1.astype(jnp.bfloat16), w2,
                preferred_element_type=jnp.float32) + b2, 0.0)
    ref = jnp.dot(h2.astype(jnp.bfloat16), w3,
                  preferred_element_type=jnp.float32) + b3
    ref = ref.astype(jnp.bfloat16)[:, :num_out].astype(jnp.float32)

    assert logits.shape == (batch, num_out)
    assert jnp.allclose(logits, ref, atol=2e-2, rtol=2e-2)

    print("KERNEL_OK")
</pallas_src>

<mosaic_0001>
module attributes {stable_mosaic.version = 11 : i64} {
  func.func @_dann_kernel(%arg0: i32, %arg1: memref<16x256xf32, #tpu.memory_space<vmem>>, %arg2: memref<256x128xbf16, #tpu.memory_space<vmem>>, %arg3: memref<1x128xf32, #tpu.memory_space<vmem>>, %arg4: memref<128x128xbf16, #tpu.memory_space<vmem>>, %arg5: memref<1x128xf32, #tpu.memory_space<vmem>>, %arg6: memref<128x128xbf16, #tpu.memory_space<vmem>>, %arg7: memref<1x128xf32, #tpu.memory_space<vmem>>, %arg8: memref<16x128xbf16, #tpu.memory_space<vmem>>) attributes {dimension_semantics = [#tpu.dimension_semantics<parallel>], iteration_bounds = array<i64: 2>, scalar_prefetch = 0 : i64, scratch_operands = 0 : i64, tpu.core_type = #tpu.core_type<tc>, window_params = [{transform_indices = @transform_0, window_bounds = array<i64: 16, 256>}, {pipeline_mode = #tpu.pipeline_mode<synchronous>, transform_indices = @transform_1, window_bounds = array<i64: 256, 128>}, {pipeline_mode = #tpu.pipeline_mode<synchronous>, transform_indices = @transform_2, window_bounds = array<i64: 1, 128>}, {pipeline_mode = #tpu.pipeline_mode<synchronous>, transform_indices = @transform_3, window_bounds = array<i64: 128, 128>}, {pipeline_mode = #tpu.pipeline_mode<synchronous>, transform_indices = @transform_4, window_bounds = array<i64: 1, 128>}, {pipeline_mode = #tpu.pipeline_mode<synchronous>, transform_indices = @transform_5, window_bounds = array<i64: 128, 128>}, {pipeline_mode = #tpu.pipeline_mode<synchronous>, transform_indices = @transform_6, window_bounds = array<i64: 1, 128>}, {transform_indices = @transform_7, window_bounds = array<i64: 16, 128>}]} {
    %c0 = arith.constant 0 : index
    %c0_0 = arith.constant 0 : index
    %0 = vector.load %arg1[%c0, %c0_0] : memref<16x256xf32, #tpu.memory_space<vmem>>, vector<16x256xf32>
    %1 = arith.truncf %0 : vector<16x256xf32> to vector<16x256xbf16>
    %c0_1 = arith.constant 0 : index
    %c0_2 = arith.constant 0 : index
    %2 = vector.load %arg2[%c0_1, %c0_2] : memref<256x128xbf16, #tpu.memory_space<vmem>>, vector<256x128xbf16>
    %cst = arith.constant dense<0.000000e+00> : vector<16x128xf32>
    %3 = tpu.matmul %1, %2, %cst {dimension_numbers = #tpu.dot_dimension_numbers<[1], [0], [0], [1], [0, 0, 1, 1], [], []>} : vector<16x256xbf16>, vector<256x128xbf16>, vector<16x128xf32> -> vector<16x128xf32>
    %c0_3 = arith.constant 0 : index
    %c0_4 = arith.constant 0 : index
    %4 = vector.load %arg3[%c0_3, %c0_4] : memref<1x128xf32, #tpu.memory_space<vmem>>, vector<1x128xf32>
    %5 = vector.broadcast %4 : vector<1x128xf32> to vector<16x128xf32>
    %6 = arith.addf %3, %5 : vector<16x128xf32>
    %cst_5 = arith.constant 0.000000e+00 : f32
    %7 = vector.broadcast %cst_5 : f32 to vector<16x128xf32>
    %8 = arith.maximumf %6, %7 : vector<16x128xf32>
    %9 = arith.truncf %8 : vector<16x128xf32> to vector<16x128xbf16>
    %c0_6 = arith.constant 0 : index
    %c0_7 = arith.constant 0 : index
    %10 = vector.load %arg4[%c0_6, %c0_7] : memref<128x128xbf16, #tpu.memory_space<vmem>>, vector<128x128xbf16>
    %cst_8 = arith.constant dense<0.000000e+00> : vector<16x128xf32>
    %11 = tpu.matmul %9, %10, %cst_8 {dimension_numbers = #tpu.dot_dimension_numbers<[1], [0], [0], [1], [0, 0, 1, 1], [], []>} : vector<16x128xbf16>, vector<128x128xbf16>, vector<16x128xf32> -> vector<16x128xf32>
    %c0_9 = arith.constant 0 : index
    %c0_10 = arith.constant 0 : index
    %12 = vector.load %arg5[%c0_9, %c0_10] : memref<1x128xf32, #tpu.memory_space<vmem>>, vector<1x128xf32>
    %13 = vector.broadcast %12 : vector<1x128xf32> to vector<16x128xf32>
    %14 = arith.addf %11, %13 : vector<16x128xf32>
    %cst_11 = arith.constant 0.000000e+00 : f32
    %15 = vector.broadcast %cst_11 : f32 to vector<16x128xf32>
    %16 = arith.maximumf %14, %15 : vector<16x128xf32>
    %17 = arith.truncf %16 : vector<16x128xf32> to vector<16x128xbf16>
    %c0_12 = arith.constant 0 : index
    %c0_13 = arith.constant 0 : index
    %18 = vector.load %arg6[%c0_12, %c0_13] : memref<128x128xbf16, #tpu.memory_space<vmem>>, vector<128x128xbf16>
    %cst_14 = arith.constant dense<0.000000e+00> : vector<16x128xf32>
    %19 = tpu.matmul %17, %18, %cst_14 {dimension_numbers = #tpu.dot_dimension_numbers<[1], [0], [0], [1], [0, 0, 1, 1], [], []>} : vector<16x128xbf16>, vector<128x128xbf16>, vector<16x128xf32> -> vector<16x128xf32>
    %c0_15 = arith.constant 0 : index
    %c0_16 = arith.constant 0 : index
    %20 = vector.load %arg7[%c0_15, %c0_16] : memref<1x128xf32, #tpu.memory_space<vmem>>, vector<1x128xf32>
    %21 = vector.broadcast %20 : vector<1x128xf32> to vector<16x128xf32>
    %22 = arith.addf %19, %21 : vector<16x128xf32>
    %23 = arith.truncf %22 : vector<16x128xf32> to vector<16x128xbf16>
    %c0_17 = arith.constant 0 : index
    %c0_18 = arith.constant 0 : index
    %24 = vector.load %arg8[%c0_17, %c0_18] : memref<16x128xbf16, #tpu.memory_space<vmem>>, vector<16x128xbf16>
    tpu.vector_store %arg8[%c0_17, %c0_18], %23 {strides = array<i32>} : memref<16x128xbf16, #tpu.memory_space<vmem>>, vector<16x128xbf16>,
    return
  }
  func.func @transform_0(%arg0: i32) -> (i32, i32) {
    %c0_i32 = arith.constant 0 : i32
    %c0_i32_0 = arith.constant 0 : i32
    return %arg0, %c0_i32 : i32, i32
  }
  func.func @transform_1(%arg0: i32) -> (i32, i32) {
    %c0_i32 = arith.constant 0 : i32
    %c0_i32_0 = arith.constant 0 : i32
    %c0_i32_1 = arith.constant 0 : i32
    return %c0_i32, %c0_i32_0 : i32, i32
  }
  func.func @transform_2(%arg0: i32) -> (i32, i32) {
    %c0_i32 = arith.constant 0 : i32
    %c0_i32_0 = arith.constant 0 : i32
    %c0_i32_1 = arith.constant 0 : i32
    return %c0_i32, %c0_i32_0 : i32, i32
  }
  func.func @transform_3(%arg0: i32) -> (i32, i32) {
    %c0_i32 = arith.constant 0 : i32
    %c0_i32_0 = arith.constant 0 : i32
    %c0_i32_1 = arith.constant 0 : i32
    return %c0_i32, %c0_i32_0 : i32, i32
  }
  func.func @transform_4(%arg0: i32) -> (i32, i32) {
    %c0_i32 = arith.constant 0 : i32
    %c0_i32_0 = arith.constant 0 : i32
    %c0_i32_1 = arith.constant 0 : i32
    return %c0_i32, %c0_i32_0 : i32, i32
  }
  func.func @transform_5(%arg0: i32) -> (i32, i32) {
    %c0_i32 = arith.constant 0 : i32
    %c0_i32_0 = arith.constant 0 : i32
    %c0_i32_1 = arith.constant 0 : i32
    return %c0_i32, %c0_i32_0 : i32, i32
  }
  func.func @transform_6(%arg0: i32) -> (i32, i32) {
    %c0_i32 = arith.constant 0 : i32
    %c0_i32_0 = arith.constant 0 : i32
    %c0_i32_1 = arith.constant 0 : i32
    return %c0_i32, %c0_i32_0 : i32, i32
  }
  func.func @transform_7(%arg0: i32) -> (i32, i32) {
    %c0_i32 = arith.constant 0 : i32
    %c0_i32_0 = arith.constant 0 : i32
    return %arg0, %c0_i32 : i32, i32
  }
}

</mosaic_0001>

<llo_original>
// kernel: tpu_custom_call.1
$region0: #{tpu_custom_call.1}
  #allocation0 [shape = 'u32[]', space=smem, size = 0x4, offset = 0x4, fixed_abs, tag = 'smem constant byte address 0x4 - core index']
  #allocation1 [shape = 'u32[144,128]{1,0:T(1,128)}', space=vmem, size = 0x12000, scoped, tag = 'internal scratch']
  %s0 = inlined_call_operand.hbm [shape: f32[24,256], index: 0, kind: input, shape index: {}]
  %s1 = inlined_call_operand.hbm [shape: bf16[256,128], index: 1, kind: input, shape index: {}]
  %s2 = inlined_call_operand.vmem [shape: f32[1,128], index: 2, kind: input, shape index: {}]
  %s3 = inlined_call_operand.hbm [shape: bf16[128,128], index: 3, kind: input, shape index: {}]
  %s4 = inlined_call_operand.vmem [shape: f32[1,128], index: 4, kind: input, shape index: {}]
  %s5 = inlined_call_operand.hbm [shape: bf16[128,128], index: 5, kind: input, shape index: {}]
  %s6 = inlined_call_operand.vmem [shape: f32[1,128], index: 6, kind: input, shape index: {}]
  %s7 = inlined_call_operand.hbm [shape: bf16[24,128], index: 7, kind: output, shape index: {}]
  %s8 = sld [smem:[#allocation0]]
  $region77: #{tpu_custom_call.1} parent=0
    _
  %s10 = ssub.s32 1, %s8
  %s11 = scalar_select 0, %s10, %s8
  $region1: #{tpu_custom_call.1} parent=0
    #allocation2 [shape = 'u8[32768]{0}', space=vmem, size = 0x8000, scoped, tag = 'input window, operand 0']
    #allocation3 [shape = 's32[2]{0}', space=sflag, size = 0x8, scoped, tag = 'scoped memory for tpu_custom_call.1']
    #allocation4 [shape = 's32[2]{0}', space=sflag, size = 0x8, scoped, tag = 'scoped memory for tpu_custom_call.1']
    #allocation5 [shape = 'u8[65536]{0}', space=vmem, size = 0x10000, scoped, tag = 'input window, operand 1, single buffered']
    #allocation6 [shape = 's32[1]{0}', space=sflag, size = 0x4, scoped, tag = 'scoped memory for tpu_custom_call.1']
    #allocation7 [shape = 'u8[32768]{0}', space=vmem, size = 0x8000, scoped, tag = 'input window, operand 3, single buffered']
    #allocation8 [shape = 'u8[32768]{0}', space=vmem, size = 0x8000, scoped, tag = 'input window, operand 5, single buffered']
    #allocation9 [shape = 's32[1]{0}', space=sflag, size = 0x4, scoped, tag = 'scoped memory for tpu_custom_call.1']
    #allocation10 [shape = 'u8[8192]{0}', space=vmem, size = 0x2000, scoped, tag = 'output window, operand 0']
    %12 = vsyncpa [#allocation3], 0
    %s13 = scalar_lea.sflag [#allocation3], 1
    %14 = vsyncpa %s13, 0
    %15 = vsyncpa [#allocation6], 0
    %16 = vsyncpa [#allocation9], 0
    %17 = vsyncpa [#allocation4], 0
    %s18 = scalar_lea.sflag [#allocation4], 1
    %19 = vsyncpa %s18, 0
    loop: start=0, step=1, limit=4
    $region2: #{tpu_custom_call.1} parent=1 // loop_pre_header
      _
    $region3: #{tpu_custom_call.1} parent=1 // loop_header
      %s21 = sphi 0, %s25
      %p22 = scmp.ge.s32.totalorder %s21, 4
      %s31 = sphi 0, %s33
      %s34 = sphi 0, %s31
      %s35 = sphi 0, %s34
      %s51 = sphi 0, %s35
      %s55 = sphi 0, %s55
      %s57 = sphi 0, %s55
      %s58 = sphi 0, %s57
      %s72 = sphi 0, %s58
      %s76 = sphi 0, %s76
      %s78 = sphi 0, %s76
      %s79 = sphi 0, %s78
      %s93 = sphi 0, %s79
      %s97 = sphi 0, %s97
      %s99 = sphi 0, %s97
      %s100 = sphi 0, %s99
      %s114 = sphi 0, %s100
      %s118 = sphi 0, %s118
      %s120 = sphi 0, %s118
      %s121 = sphi 0, %s120
      %s135 = sphi 0, %s121
      %s139 = sphi 0, %s139
      %s141 = sphi 0, %s139
      %s142 = sphi 0, %s141
      %s156 = sphi 0, %s142
      %s160 = sphi 0, %s160
      %s162 = sphi 0, %s160
      %s163 = sphi 0, %s162
      %s177 = sphi 0, %s163
      %s183 = sphi 0, %s185
      %s186 = sphi 0, %s183
      %s187 = sphi 0, %s186
      %s203 = sphi 0, %s187
    $region4: #{tpu_custom_call.1} parent=1 // loop_header_branch
      %24 = sbr.rel (%p22) target = $region8
    $region5: #{tpu_custom_call.1} parent=1 // loop_body
      %s26 = ssub.s32 %s21, 1
      %s27 = ssub.s32 %s21, 2
      %s28 = sadd.s32 %s21, 1
      %s29 = ssub.s32 %s21, %s28
      %p30 = scmp.eq.s32.totalorder %s29, 0
      %s32 = sadd.s32 %s31, 1
      %s33 = scalar_select %p30, %s31, %s32
      %p36 = pneg %p30
      %p37 = scmp.eq.s32.totalorder %s21, 1
      %p38 = por %p36, %p37
      %p39 = scmp.ne.s32.totalorder %s31, %s34
      %p40 = scmp.eq.s32.totalorder %s21, 0
      %p41 = por %p39, %p40
      %p42 = scmp.ne.s32.totalorder %s31, %s34
      %p43 = scmp.eq.s32.totalorder %s26, 1
      %p44 = por %p42, %p43
      %p45 = scmp.ne.s32.totalorder %s34, %s35
      %p46 = scmp.eq.s32.totalorder %s26, 0
      %p47 = por %p45, %p46
      %p48 = scmp.ne.s32.totalorder %s34, %s35
      %p49 = scmp.eq.s32.totalorder %s27, 1
      %p50 = por %p48, %p49
      %p52 = scmp.ne.s32.totalorder %s35, %s51
      %p53 = scmp.eq.s32.totalorder %s27, 0
      %p54 = por %p52, %p53
      %s56 = sadd.s32 %s55, 1
      %p59 = scmp.eq.s32.totalorder %s21, 1
      %p60 = scmp.ne.s32.totalorder %s55, %s57
      %p61 = scmp.eq.s32.totalorder %s21, 0
      %p62 = por %p60, %p61
      %p63 = scmp.ne.s32.totalorder %s55, %s57
      %p64 = scmp.eq.s32.totalorder %s26, 1
      %p65 = por %p63, %p64
      %p66 = scmp.ne.s32.totalorder %s57, %s58
      %p67 = scmp.eq.s32.totalorder %s26, 0
      %p68 = por %p66, %p67
      %p69 = scmp.ne.s32.totalorder %s57, %s58
      %p70 = scmp.eq.s32.totalorder %s27, 1
      %p71 = por %p69, %p70
      %p73 = scmp.ne.s32.totalorder %s58, %s72
      %p74 = scmp.eq.s32.totalorder %s27, 0
      %p75 = por %p73, %p74
      %s77 = sadd.s32 %s76, 1
      %p80 = scmp.eq.s32.totalorder %s21, 1
      %p81 = scmp.ne.s32.totalorder %s76, %s78
      %p82 = scmp.eq.s32.totalorder %s21, 0
      %p83 = por %p81, %p82
      %p84 = scmp.ne.s32.totalorder %s76, %s78
      %p85 = scmp.eq.s32.totalorder %s26, 1
      %p86 = por %p84, %p85
      %p87 = scmp.ne.s32.totalorder %s78, %s79
      %p88 = scmp.eq.s32.totalorder %s26, 0
      %p89 = por %p87, %p88
      %p90 = scmp.ne.s32.totalorder %s78, %s79
      %p91 = scmp.eq.s32.totalorder %s27, 1
      %p92 = por %p90, %p91
      %p94 = scmp.ne.s32.totalorder %s79, %s93
      %p95 = scmp.eq.s32.totalorder %s27, 0
      %p96 = por %p94, %p95
      %s98 = sadd.s32 %s97, 1
      %p101 = scmp.eq.s32.totalorder %s21, 1
      %p102 = scmp.ne.s32.totalorder %s97, %s99
      %p103 = scmp.eq.s32.totalorder %s21, 0
      %p104 = por %p102, %p103
      %p105 = scmp.ne.s32.totalorder %s97, %s99
      %p106 = scmp.eq.s32.totalorder %s26, 1
      %p107 = por %p105, %p106
      %p108 = scmp.ne.s32.totalorder %s99, %s100
      %p109 = scmp.eq.s32.totalorder %s26, 0
      %p110 = por %p108, %p109
      %p111 = scmp.ne.s32.totalorder %s99, %s100
      %p112 = scmp.eq.s32.totalorder %s27, 1
      %p113 = por %p111, %p112
      %p115 = scmp.ne.s32.totalorder %s100, %s114
      %p116 = scmp.eq.s32.totalorder %s27, 0
      %p117 = por %p115, %p116
      %s119 = sadd.s32 %s118, 1
      %p122 = scmp.eq.s32.totalorder %s21, 1
      %p123 = scmp.ne.s32.totalorder %s118, %s120
      %p124 = scmp.eq.s32.totalorder %s21, 0
      %p125 = por %p123, %p124
      %p126 = scmp.ne.s32.totalorder %s118, %s120
      %p127 = scmp.eq.s32.totalorder %s26, 1
      %p128 = por %p126, %p127
      %p129 = scmp.ne.s32.totalorder %s120, %s121
      %p130 = scmp.eq.s32.totalorder %s26, 0
      %p131 = por %p129, %p130
      %p132 = scmp.ne.s32.totalorder %s120, %s121
      %p133 = scmp.eq.s32.totalorder %s27, 1
      %p134 = por %p132, %p133
      %p136 = scmp.ne.s32.totalorder %s121, %s135
      %p137 = scmp.eq.s32.totalorder %s27, 0
      %p138 = por %p136, %p137
      %s140 = sadd.s32 %s139, 1
      %p143 = scmp.eq.s32.totalorder %s21, 1
      %p144 = scmp.ne.s32.totalorder %s139, %s141
      %p145 = scmp.eq.s32.totalorder %s21, 0
      %p146 = por %p144, %p145
      %p147 = scmp.ne.s32.totalorder %s139, %s141
      %p148 = scmp.eq.s32.totalorder %s26, 1
      %p149 = por %p147, %p148
      %p150 = scmp.ne.s32.totalorder %s141, %s142
      %p151 = scmp.eq.s32.totalorder %s26, 0
      %p152 = por %p150, %p151
      %p153 = scmp.ne.s32.totalorder %s141, %s142
      %p154 = scmp.eq.s32.totalorder %s27, 1
      %p155 = por %p153, %p154
      %p157 = scmp.ne.s32.totalorder %s142, %s156
      %p158 = scmp.eq.s32.totalorder %s27, 0
      %p159 = por %p157, %p158
      %s161 = sadd.s32 %s160, 1
      %p164 = scmp.eq.s32.totalorder %s21, 1
      %p165 = scmp.ne.s32.totalorder %s160, %s162
      %p166 = scmp.eq.s32.totalorder %s21, 0
      %p167 = por %p165, %p166
      %p168 = scmp.ne.s32.totalorder %s160, %s162
      %p169 = scmp.eq.s32.totalorder %s26, 1
      %p170 = por %p168, %p169
      %p171 = scmp.ne.s32.totalorder %s162, %s163
      %p172 = scmp.eq.s32.totalorder %s26, 0
      %p173 = por %p171, %p172
      %p174 = scmp.ne.s32.totalorder %s162, %s163
      %p175 = scmp.eq.s32.totalorder %s27, 1
      %p176 = por %p174, %p175
      %p178 = scmp.ne.s32.totalorder %s163, %s177
      %p179 = scmp.eq.s32.totalorder %s27, 0
      %p180 = por %p178, %p179
      %s181 = ssub.s32 %s21, %s28
      %p182 = scmp.eq.s32.totalorder %s181, 0
      %s184 = sadd.s32 %s183, 1
      %s185 = scalar_select %p182, %s183, %s184
      %p188 = pneg %p182
      %p189 = scmp.eq.s32.totalorder %s21, 1
      %p190 = por %p188, %p189
      %p191 = scmp.ne.s32.totalorder %s183, %s186
      %p192 = scmp.eq.s32.totalorder %s21, 0
      %p193 = por %p191, %p192
      %p194 = scmp.ne.s32.totalorder %s183, %s186
      %p195 = scmp.eq.s32.totalorder %s26, 1
      %p196 = por %p194, %p195
      %p197 = scmp.ne.s32.totalorder %s186, %s187
      %p198 = scmp.eq.s32.totalorder %s26, 0
      %p199 = por %p197, %p198
      %p200 = scmp.ne.s32.totalorder %s186, %s187
      %p201 = scmp.eq.s32.totalorder %s27, 1
      %p202 = por %p200, %p201
      %p204 = scmp.ne.s32.totalorder %s187, %s203
      %p205 = scmp.eq.s32.totalorder %s27, 0
      %p206 = por %p204, %p205
      %p207 = scmp.le.s32.totalorder 1, %s21
      %p208 = scmp.lt.s32.totalorder %s21, 3
      %p209 = pnand %p207, %p208
      %p210 = pneg %p209
      // Predicated region
      $region9: #{tpu_custom_call.1} parent=5 // pred_check
        _
      $region10: #{tpu_custom_call.1} parent=5 // pred_check_branch
        %212 = sbr.rel (%p209) target = $region12
      $region11: #{tpu_custom_call.1} parent=5 // pred_region
        %s213 = ssub.s32 %s21, 1
        // Predicated region
        $region13: #{tpu_custom_call.1} parent=11 // pred_check
          %p214 = pneg %p68
        $region14: #{tpu_custom_call.1} parent=11 // pred_check_branch
          %216 = sbr.rel (%p214) target = $region16
        $region15: #{tpu_custom_call.1} parent=11 // pred_region
          %s218 = ssub.s32 2048, 2048
          %219 = vsyncadd [#allocation6], %s218
          %s220 = sshll.u32 [#allocation5], 4
          %s221 = int_to_ptr.vmem [resolvable:$true] %s220
          %226 = dma.hbm_to_vmem [thread:$0]  %s1, 2048, %s221, [#allocation6], 64, 64, 4
        $region16: #{tpu_custom_call.1} parent=11 // pred_fallthru
          _
        // Predicated region
        $region17: #{tpu_custom_call.1} parent=11 // pred_check
          %p227 = pneg %p89
        $region18: #{tpu_custom_call.1} parent=11 // pred_check_branch
          %229 = sbr.rel (%p227) target = $region20
        $region19: #{tpu_custom_call.1} parent=11 // pred_region
          _
        $region20: #{tpu_custom_call.1} parent=11 // pred_fallthru
          _
        // Predicated region
        $region21: #{tpu_custom_call.1} parent=11 // pred_check
          %p230 = pneg %p110
        $region22: #{tpu_custom_call.1} parent=11 // pred_check_branch
          %232 = sbr.rel (%p230) target = $region24
        $region23: #{tpu_custom_call.1} parent=11 // pred_region
          %s234 = ssub.s32 1024, 1024
          %235 = vsyncadd [#allocation6], %s234
          %s236 = sshll.u32 [#allocation7], 4
          %s237 = int_to_ptr.vmem [resolvable:$true] %s236
          %242 = dma.hbm_to_vmem [thread:$0]  %s3, 1024, %s237, [#allocation6], 64, 64, 4
        $region24: #{tpu_custom_call.1} parent=11 // pred_fallthru
          _
        // Predicated region
        $region25: #{tpu_custom_call.1} parent=11 // pred_check
          %p243 = pneg %p131
        $region26: #{tpu_custom_call.1} parent=11 // pred_check_branch
          %245 = sbr.rel (%p243) target = $region28
        $region27: #{tpu_custom_call.1} parent=11 // pred_region
          _
        $region28: #{tpu_custom_call.1} parent=11 // pred_fallthru
          _
        // Predicated region
        $region29: #{tpu_custom_call.1} parent=11 // pred_check
          %p246 = pneg %p152
        $region30: #{tpu_custom_call.1} parent=11 // pred_check_branch
          %248 = sbr.rel (%p246) target = $region32
        $region31: #{tpu_custom_call.1} parent=11 // pred_region
          %s250 = ssub.s32 1024, 1024
          %251 = vsyncadd [#allocation9], %s250
          %s252 = sshll.u32 [#allocation8], 4
          %s253 = int_to_ptr.vmem [resolvable:$true] %s252
          %258 = dma.hbm_to_vmem [thread:$0]  %s5, 1024, %s253, [#allocation9], 64, 64, 4
        $region32: #{tpu_custom_call.1} parent=11 // pred_fallthru
          _
        // Predicated region
        $region33: #{tpu_custom_call.1} parent=11 // pred_check
          %p259 = pneg %p173
        $region34: #{tpu_custom_call.1} parent=11 // pred_check_branch
          %261 = sbr.rel (%p259) target = $region36
        $region35: #{tpu_custom_call.1} parent=11 // pred_region
          _
        $region36: #{tpu_custom_call.1} parent=11 // pred_fallthru
          _
      $region12: #{tpu_custom_call.1} parent=5 // pred_fallthru
        _
      %p262 = scmp.lt.s32.totalorder %s21, 2
      // Predicated region
      $region37: #{tpu_custom_call.1} parent=5 // pred_check
        %p263 = pneg %p262
      $region38: #{tpu_custom_call.1} parent=5 // pred_check_branch
        %265 = sbr.rel (%p263) target = $region40
      $region39: #{tpu_custom_call.1} parent=5 // pred_region
        // Predicated region
        $region41: #{tpu_custom_call.1} parent=39 // pred_check
          %p266 = pneg %p41
        $region42: #{tpu_custom_call.1} parent=39 // pred_check_branch
          %268 = sbr.rel (%p266) target = $region44
        $region43: #{tpu_custom_call.1} parent=39 // pred_region
          %s269 = sand.u32 %s31, 1
          %s270 = scalar_lea.sflag [#allocation3], %s269
          %s271 = sand.u32 %s31, 1
          %s272 = smul.addr %s271, 32
          %s273 = scalar_lea.vmem [#allocation2], %s272
          %s274 = smul.u32 2, %s21
          %s275 = ssub.s32 3, %s274
          %p276 = scmp.lt.s32.totalorder %s275, 2
          %s277 = scalar_select %p276, %s275, 2
          %s278 = smul.u32 128, %s277
          %s279 = smul.u32 %s278, 2
          %s281 = ssub.s32 512, %s279
          %282 = vsyncadd %s270, %s281
          %p283 = scmp.ne.s32.totalorder 0, %s279
          %s284 = smul.addr %s274, 2
          %s285 = smul.addr %s284, 128
          %s286 = scalar_lea.hbm %s0, %s285
          %s287 = smul.u32 16, %s277
          %s288 = sshll.u32 %s273, 4
          %s289 = int_to_ptr.vmem [resolvable:$true] %s288
          %s290 = sshll.u32 %s287, 4
          %294 = dma.hbm_to_vmem [thread:$0]  (%p283), %s286, %s290, %s289, %s270, 256, 256, 16
        $region44: #{tpu_custom_call.1} parent=39 // pred_fallthru
          _
      $region40: #{tpu_custom_call.1} parent=5 // pred_fallthru
        _
      %p295 = scmp.le.s32.totalorder 1, %s21
      %p296 = scmp.lt.s32.totalorder %s21, 3
      %p297 = pnand %p295, %p296
      %p298 = pneg %p297
      // Predicated region
      $region45: #{tpu_custom_call.1} parent=5 // pred_check
        _
      $region46: #{tpu_custom_call.1} parent=5 // pred_check_branch
        %300 = sbr.rel (%p297) target = $region48
      $region47: #{tpu_custom_call.1} parent=5 // pred_region
        %s301 = ssub.s32 %s21, 1
        %s302 = sand.u32 %s34, 1
        %s303 = scalar_lea.sflag [#allocation3], %s302
        %s304 = sand.u32 %s34, 1
        %s305 = smul.addr %s304, 32
        %s306 = scalar_lea.vmem [#allocation2], %s305
        // Predicated region
        $region49: #{tpu_custom_call.1} parent=47 // pred_check
          %p307 = pneg %p47
        $region50: #{tpu_custom_call.1} parent=47 // pred_check_branch
          %309 = sbr.rel (%p307) target = $region52
        $region51: #{tpu_custom_call.1} parent=47 // pred_region
          %310 = dma.done %s303, 512
        $region52: #{tpu_custom_call.1} parent=47 // pred_fallthru
          _
        // Predicated region
        $region53: #{tpu_custom_call.1} parent=47 // pred_check
          %p311 = pneg %p68
        $region54: #{tpu_custom_call.1} parent=47 // pred_check_branch
          %313 = sbr.rel (%p311) target = $region56
        $region55: #{tpu_custom_call.1} parent=47 // pred_region
          %314 = dma.done [#allocation6], 2048
        $region56: #{tpu_custom_call.1} parent=47 // pred_fallthru
          _
        // Predicated region
        $region57: #{tpu_custom_call.1} parent=47 // pred_check
          %p315 = pneg %p110
        $region58: #{tpu_custom_call.1} parent=47 // pred_check_branch
          %317 = sbr.rel (%p315) target = $region60
        $region59: #{tpu_custom_call.1} parent=47 // pred_region
          %318 = dma.done [#allocation6], 1024
        $region60: #{tpu_custom_call.1} parent=47 // pred_fallthru
          _
        // Predicated region
        $region61: #{tpu_custom_call.1} parent=47 // pred_check
          %p319 = pneg %p152
        $region62: #{tpu_custom_call.1} parent=47 // pred_check_branch
          %321 = sbr.rel (%p319) target = $region64
        $region63: #{tpu_custom_call.1} parent=47 // pred_region
          %322 = dma.done [#allocation9], 1024
        $region64: #{tpu_custom_call.1} parent=47 // pred_fallthru
          _
        %s323 = sand.u32 %s34, 1
        %s324 = scalar_lea.sflag [#allocation3], %s323
        %s325 = sand.u32 %s34, 1
        %s326 = smul.addr %s325, 32
        %s327 = scalar_lea.vmem [#allocation2], %s326
        %p328 = pneg %p47
        %p329 = pneg %p44
        %p330 = pneg %p68
        %p331 = pneg %p65
        %p332 = pneg %p89
        %p333 = pneg %p86
        %p334 = pneg %p110
        %p335 = pneg %p107
        %p336 = pneg %p131
        %p337 = pneg %p128
        %p338 = pneg %p152
        %p339 = pneg %p149
        %p340 = pneg %p173
        %p341 = pneg %p170
        %p342 = pneg %p199
        %p343 = pneg %p196
        %s344 = sand.u32 %s186, 1
        %s345 = scalar_lea.sflag [#allocation4], %s344
        %s346 = sand.u32 %s186, 1
        %s347 = smul.addr %s346, 8
        %s348 = scalar_lea.vmem [#allocation10], %s347
        %s349 = smul.u32 2, %s26
        %s350 = ssub.s32 3, %s349
        %p351 = scmp.lt.s32.totalorder %s350, 2
        %s352 = scalar_select %p351, %s350, 2
        %s353 = smul.u32 128, %s352
        %s354 = smul.u32 %s353, 2
        %s355 = smul.u32 2, %s26
        %s356 = ssub.s32 3, %s355
        %p357 = scmp.lt.s32.totalorder %s356, 2
        %s358 = scalar_select %p357, %s356, 2
        %s359 = smul.u32 64, %s358
        %v361 = vld [vmem:[%s306] sm:$0xff]
        %v362 = vld [vmem:[%s306 + $0x8] sm:$0xff]
        %v363 = vld [vmem:[%s306 + $0x10] sm:$0xff]
        %v364 = vld [vmem:[%s306 + $0x18] sm:$0xff]
        %v365 = vpack.c.bf16 %v363, %v361
        %v366 = vpack.c.bf16 %v364, %v362
        %v367 = vld [vmem:[#allocation5] sm:$0xf]
        %v368 = vld [vmem:[#allocation5 + $0x4] sm:$0xf]
        %v369 = vld [vmem:[#allocation5 + $0x8] sm:$0xf]
        %v370 = vld [vmem:[#allocation5 + $0xc] sm:$0xf]
        %v371 = vld [vmem:[#allocation5 + $0x10] sm:$0xf]
        %v372 = vld [vmem:[#allocation5 + $0x14] sm:$0xf]
        %v373 = vld [vmem:[#allocation5 + $0x18] sm:$0xf]
        %v374 = vld [vmem:[#allocation5 + $0x1c] sm:$0xf]
        %v375 = vld [vmem:[#allocation5 + $0x20] sm:$0xf]
        %v376 = vld [vmem:[#allocation5 + $0x24] sm:$0xf]
        %v377 = vld [vmem:[#allocation5 + $0x28] sm:$0xf]
        %v378 = vld [vmem:[#allocation5 + $0x2c] sm:$0xf]
        %v379 = vld [vmem:[#allocation5 + $0x30] sm:$0xf]
        %v380 = vld [vmem:[#allocation5 + $0x34] sm:$0xf]
        %v381 = vld [vmem:[#allocation5 + $0x38] sm:$0xf]
        %v382 = vld [vmem:[#allocation5 + $0x3c] sm:$0xf]
        %v383 = vld [vmem:[#allocation5 + $0x40] sm:$0xf]
        %v384 = vld [vmem:[#allocation5 + $0x44] sm:$0xf]
        %v385 = vld [vmem:[#allocation5 + $0x48] sm:$0xf]
        %v386 = vld [vmem:[#allocation5 + $0x4c] sm:$0xf]
        %v387 = vld [vmem:[#allocation5 + $0x50] sm:$0xf]
        %v388 = vld [vmem:[#allocation5 + $0x54] sm:$0xf]
        %v389 = vld [vmem:[#allocation5 + $0x58] sm:$0xf]
        %v390 = vld [vmem:[#allocation5 + $0x5c] sm:$0xf]
        %v391 = vld [vmem:[#allocation5 + $0x60] sm:$0xf]
        %v392 = vld [vmem:[#allocation5 + $0x64] sm:$0xf]
        %v393 = vld [vmem:[#allocation5 + $0x68] sm:$0xf]
        %v394 = vld [vmem:[#allocation5 + $0x6c] sm:$0xf]
        %v395 = vld [vmem:[#allocation5 + $0x70] sm:$0xf]
        %v396 = vld [vmem:[#allocation5 + $0x74] sm:$0xf]
        %v397 = vld [vmem:[#allocation5 + $0x78] sm:$0xf]
        %v398 = vld [vmem:[#allocation5 + $0x7c] sm:$0xf]
        %v399 = vld [vmem:[%s2] sm:$0x1]
        %v401 = vlaneseq
        %v402 = vshrl.u32 %v401, 7
        %v403 = vsub.s32 0, %v402
        %v404 = vrot.slane %v399, %v403
        %v438 = vunpack.c.l.b16 %v367
        %v439 = vunpack.c.l.b16 %v368
        %v440 = vunpack.c.l.b16 %v369
        %v441 = vunpack.c.l.b16 %v370
        %v442 = vunpack.c.l.b16 %v371
        %v443 = vunpack.c.l.b16 %v372
        %v444 = vunpack.c.l.b16 %v373
        %v445 = vunpack.c.l.b16 %v374
        %v446 = vunpack.c.l.b16 %v375
        %v447 = vunpack.c.l.b16 %v376
        %v448 = vunpack.c.l.b16 %v377
        %v449 = vunpack.c.l.b16 %v378
        %v450 = vunpack.c.l.b16 %v379
        %v451 = vunpack.c.l.b16 %v380
        %v452 = vunpack.c.l.b16 %v381
        %v453 = vunpack.c.l.b16 %v382
        %v454 = vunpack.c.l.b16 %v383
        %v455 = vunpack.c.l.b16 %v384
        %v456 = vunpack.c.l.b16 %v385
        %v457 = vunpack.c.l.b16 %v386
        %v458 = vunpack.c.l.b16 %v387
        %v459 = vunpack.c.l.b16 %v388
        %v460 = vunpack.c.l.b16 %v389
        %v461 = vunpack.c.l.b16 %v390
        %v462 = vunpack.c.l.b16 %v391
        %v463 = vunpack.c.l.b16 %v392
        %v464 = vunpack.c.l.b16 %v393
        %v465 = vunpack.c.l.b16 %v394
        %v466 = vunpack.c.l.b16 %v395
        %v467 = vunpack.c.l.b16 %v396
        %v468 = vunpack.c.l.b16 %v397
        %v469 = vunpack.c.l.b16 %v398
        %v470 = vpack.c.b16 %v439, %v438
        %v471 = vpack.c.b16 %v441, %v440
        %v472 = vpack.c.b16 %v443, %v442
        %v473 = vpack.c.b16 %v445, %v444
        %v474 = vpack.c.b16 %v447, %v446
        %v475 = vpack.c.b16 %v449, %v448
        %v476 = vpack.c.b16 %v451, %v450
        %v477 = vpack.c.b16 %v453, %v452
        %v478 = vpack.c.b16 %v455, %v454
        %v479 = vpack.c.b16 %v457, %v456
        %v480 = vpack.c.b16 %v459, %v458
        %v481 = vpack.c.b16 %v461, %v460
        %v482 = vpack.c.b16 %v463, %v462
        %v483 = vpack.c.b16 %v465, %v464
        %v484 = vpack.c.b16 %v467, %v466
        %v485 = vpack.c.b16 %v469, %v468
        %502 = vmatprep.subr.bf16.mxu0 0
        %503 = vmatpush1.bf16.msra.mxu0 %v470
        %504 = vmatprep.subr.bf16.mxu0 0
        %505 = vmatpush1.bf16.msra.mxu0 %v471
        %506 = vmatprep.subr.bf16.mxu0 0
        %507 = vmatpush1.bf16.msra.mxu0 %v472
        %508 = vmatprep.subr.bf16.mxu0 0
        %509 = vmatpush1.bf16.msra.mxu0 %v473
        %510 = vmatprep.subr.bf16.mxu0 0
        %511 = vmatpush1.bf16.msra.mxu0 %v474
        %512 = vmatprep.subr.bf16.mxu0 0
        %513 = vmatpush1.bf16.msra.mxu0 %v475
        %514 = vmatprep.subr.bf16.mxu0 0
        %515 = vmatpush1.bf16.msra.mxu0 %v476
        %516 = vmatprep.subr.bf16.mxu0 0
        %517 = vmatpush1.bf16.msra.mxu0 %v477
        %518 = vmatprep.subr.bf16.mxu0 0
        %519 = vmatpush1.bf16.msra.mxu0 %v478
        %520 = vmatprep.subr.bf16.mxu0 0
        %521 = vmatpush1.bf16.msra.mxu0 %v479
        %522 = vmatprep.subr.bf16.mxu0 0
        %523 = vmatpush1.bf16.msra.mxu0 %v480
        %524 = vmatprep.subr.bf16.mxu0 0
        %525 = vmatpush1.bf16.msra.mxu0 %v481
        %526 = vmatprep.subr.bf16.mxu0 0
        %527 = vmatpush1.bf16.msra.mxu0 %v482
        %528 = vmatprep.subr.bf16.mxu0 0
        %529 = vmatpush1.bf16.msra.mxu0 %v483
        %530 = vmatprep.subr.bf16.mxu0 0
        %531 = vmatpush1.bf16.msra.mxu0 %v484
        %532 = vmatprep.subr.bf16.mxu0 0
        %533 = vmatpush1.bf16.msra.mxu0 %v485
        %534 = vmatprep.mubr.bf16.mxu0 %v366
        %535 = vmatmul.mubr.bf16.gmra.mrb[0].mxu0 %v365
        %v536 = vpop.f32.mrb[0].mxu0
        %v537 = vadd.f32 %v404, %v536
        %v538 = vpop.f32.mrb[0].mxu0
        %v539 = vpop.f32.mrb[0].mxu0
        %v540 = vadd.f32 %v404, %v539
        %v541 = vpop.f32.mrb[0].mxu0
        %542 = vdwg.mxu0
        %v543 = vmax.f32 %v537, 0.0
        %v544 = vmax.f32 %v540, 0.0
        %v545 = vpack.c.bf16 %v544, %v543
        %v546 = vld [vmem:[#allocation7] sm:$0xf]
        %v547 = vld [vmem:[#allocation7 + $0x4] sm:$0xf]
        %v548 = vld [vmem:[#allocation7 + $0x8] sm:$0xf]
        %v549 = vld [vmem:[#allocation7 + $0xc] sm:$0xf]
        %v550 = vld [vmem:[#allocation7 + $0x10] sm:$0xf]
        %v551 = vld [vmem:[#allocation7 + $0x14] sm:$0xf]
        %v552 = vld [vmem:[#allocation7 + $0x18] sm:$0xf]
        %v553 = vld [vmem:[#allocation7 + $0x1c] sm:$0xf]
        %v554 = vld [vmem:[#allocation7 + $0x20] sm:$0xf]
        %v555 = vld [vmem:[#allocation7 + $0x24] sm:$0xf]
        %v556 = vld [vmem:[#allocation7 + $0x28] sm:$0xf]
        %v557 = vld [vmem:[#allocation7 + $0x2c] sm:$0xf]
        %v558 = vld [vmem:[#allocation7 + $0x30] sm:$0xf]
        %v559 = vld [vmem:[#allocation7 + $0x34] sm:$0xf]
        %v560 = vld [vmem:[#allocation7 + $0x38] sm:$0xf]
        %v561 = vld [vmem:[#allocation7 + $0x3c] sm:$0xf]
        %v562 = vld [vmem:[%s4] sm:$0x1]
        %v564 = vlaneseq
        %v565 = vshrl.u32 %v564, 7
        %v566 = vsub.s32 0, %v565
        %v567 = vrot.slane %v562, %v566
        %v585 = vunpack.c.l.b16 %v546
        %v586 = vunpack.c.l.b16 %v547
        %v587 = vunpack.c.l.b16 %v548
        %v588 = vunpack.c.l.b16 %v549
        %v589 = vunpack.c.l.b16 %v550
        %v590 = vunpack.c.l.b16 %v551
        %v591 = vunpack.c.l.b16 %v552
        %v592 = vunpack.c.l.b16 %v553
        %v593 = vunpack.c.l.b16 %v554
        %v594 = vunpack.c.l.b16 %v555
        %v595 = vunpack.c.l.b16 %v556
        %v596 = vunpack.c.l.b16 %v557
        %v597 = vunpack.c.l.b16 %v558
        %v598 = vunpack.c.l.b16 %v559
        %v599 = vunpack.c.l.b16 %v560
        %v600 = vunpack.c.l.b16 %v561
        %v601 = vpack.c.b16 %v586, %v585
        %v602 = vpack.c.b16 %v588, %v587
        %v603 = vpack.c.b16 %v590, %v589
        %v604 = vpack.c.b16 %v592, %v591
        %v605 = vpack.c.b16 %v594, %v593
        %v606 = vpack.c.b16 %v596, %v595
        %v607 = vpack.c.b16 %v598, %v597
        %v608 = vpack.c.b16 %v600, %v599
        %617 = vmatprep.subr.bf16.mxu0 0
        %618 = vmatpush1.bf16.msra.mxu0 %v601
        %619 = vmatprep.subr.bf16.mxu0 0
        %620 = vmatpush1.bf16.msra.mxu0 %v602
        %621 = vmatprep.subr.bf16.mxu0 0
        %622 = vmatpush1.bf16.msra.mxu0 %v603
        %623 = vmatprep.subr.bf16.mxu0 0
        %624 = vmatpush1.bf16.msra.mxu0 %v604
        %625 = vmatprep.subr.bf16.mxu0 0
        %626 = vmatpush1.bf16.msra.mxu0 %v605
        %627 = vmatprep.subr.bf16.mxu0 0
        %628 = vmatpush1.bf16.msra.mxu0 %v606
        %629 = vmatprep.subr.bf16.mxu0 0
        %630 = vmatpush1.bf16.msra.mxu0 %v607
        %631 = vmatprep.subr.bf16.mxu0 0
        %632 = vmatpush1.bf16.msra.mxu0 %v608
        %633 = vmatprep.subr.bf16.mxu0 0
        %634 = vmatpush1.bf16.msra.mxu0 0
        %635 = vmatprep.subr.bf16.mxu0 0
        %636 = vmatpush1.bf16.msra.mxu0 0
        %637 = vmatprep.subr.bf16.mxu0 0
        %638 = vmatpush1.bf16.msra.mxu0 0
        %639 = vmatprep.subr.bf16.mxu0 0
        %640 = vmatpush1.bf16.msra.mxu0 0
        %641 = vmatprep.subr.bf16.mxu0 0
        %642 = vmatpush1.bf16.msra.mxu0 0
        %643 = vmatprep.subr.bf16.mxu0 0
        %644 = vmatpush1.bf16.msra.mxu0 0
        %645 = vmatprep.subr.bf16.mxu0 0
        %646 = vmatpush1.bf16.msra.mxu0 0
        %647 = vmatprep.subr.bf16.mxu0 0
        %648 = vmatpush1.bf16.msra.mxu0 0
        %649 = vmatprep.mubr.bf16.mxu0 0
        %650 = vmatmul.mubr.bf16.gmra.mrb[0].mxu0 %v545
        %v651 = vpop.f32.mrb[0].mxu0
        %v652 = vadd.f32 %v567, %v651
        %v653 = vpop.f32.mrb[0].mxu0
        %v654 = vpop.f32.mrb[0].mxu0
        %v655 = vadd.f32 %v567, %v654
        %v656 = vpop.f32.mrb[0].mxu0
        %657 = vdwg.mxu0
        %v658 = vmax.f32 %v652, 0.0
        %v659 = vmax.f32 %v655, 0.0
        %v660 = vpack.c.bf16 %v659, %v658
        %v661 = vld [vmem:[#allocation8] sm:$0xf]
        %v662 = vld [vmem:[#allocation8 + $0x4] sm:$0xf]
        %v663 = vld [vmem:[#allocation8 + $0x8] sm:$0xf]
        %v664 = vld [vmem:[#allocation8 + $0xc] sm:$0xf]
        %v665 = vld [vmem:[#allocation8 + $0x10] sm:$0xf]
        %v666 = vld [vmem:[#allocation8 + $0x14] sm:$0xf]
        %v667 = vld [vmem:[#allocation8 + $0x18] sm:$0xf]
        %v668 = vld [vmem:[#allocation8 + $0x1c] sm:$0xf]
        %v669 = vld [vmem:[#allocation8 + $0x20] sm:$0xf]
        %v670 = vld [vmem:[#allocation8 + $0x24] sm:$0xf]
        %v671 = vld [vmem:[#allocation8 + $0x28] sm:$0xf]
        %v672 = vld [vmem:[#allocation8 + $0x2c] sm:$0xf]
        %v673 = vld [vmem:[#allocation8 + $0x30] sm:$0xf]
        %v674 = vld [vmem:[#allocation8 + $0x34] sm:$0xf]
        %v675 = vld [vmem:[#allocation8 + $0x38] sm:$0xf]
        %v676 = vld [vmem:[#allocation8 + $0x3c] sm:$0xf]
        %v677 = vld [vmem:[%s6] sm:$0x1]
        %v679 = vlaneseq
        %v680 = vshrl.u32 %v679, 7
        %v681 = vsub.s32 0, %v680
        %v682 = vrot.slane %v677, %v681
        %v700 = vunpack.c.l.b16 %v661
        %v701 = vunpack.c.l.b16 %v662
        %v702 = vunpack.c.l.b16 %v663
        %v703 = vunpack.c.l.b16 %v664
        %v704 = vunpack.c.l.b16 %v665
        %v705 = vunpack.c.l.b16 %v666
        %v706 = vunpack.c.l.b16 %v667
        %v707 = vunpack.c.l.b16 %v668
        %v708 = vunpack.c.l.b16 %v669
        %v709 = vunpack.c.l.b16 %v670
        %v710 = vunpack.c.l.b16 %v671
        %v711 = vunpack.c.l.b16 %v672
        %v712 = vunpack.c.l.b16 %v673
        %v713 = vunpack.c.l.b16 %v674
        %v714 = vunpack.c.l.b16 %v675
        %v715 = vunpack.c.l.b16 %v676
        %v716 = vpack.c.b16 %v701, %v700
        %v717 = vpack.c.b16 %v703, %v702
        %v718 = vpack.c.b16 %v705, %v704
        %v719 = vpack.c.b16 %v707, %v706
        %v720 = vpack.c.b16 %v709, %v708
        %v721 = vpack.c.b16 %v711, %v710
        %v722 = vpack.c.b16 %v713, %v712
        %v723 = vpack.c.b16 %v715, %v714
        %732 = vmatprep.subr.bf16.mxu0 0
        %733 = vmatpush1.bf16.msra.mxu0 %v716
        %734 = vmatprep.subr.bf16.mxu0 0
        %735 = vmatpush1.bf16.msra.mxu0 %v717
        %736 = vmatprep.subr.bf16.mxu0 0
        %737 = vmatpush1.bf16.msra.mxu0 %v718
        %738 = vmatprep.subr.bf16.mxu0 0
        %739 = vmatpush1.bf16.msra.mxu0 %v719
        %740 = vmatprep.subr.bf16.mxu0 0
        %741 = vmatpush1.bf16.msra.mxu0 %v720
        %742 = vmatprep.subr.bf16.mxu0 0
        %743 = vmatpush1.bf16.msra.mxu0 %v721
        %744 = vmatprep.subr.bf16.mxu0 0
        %745 = vmatpush1.bf16.msra.mxu0 %v722
        %746 = vmatprep.subr.bf16.mxu0 0
        %747 = vmatpush1.bf16.msra.mxu0 %v723
        %748 = vmatprep.subr.bf16.mxu0 0
        %749 = vmatpush1.bf16.msra.mxu0 0
        %750 = vmatprep.subr.bf16.mxu0 0
        %751 = vmatpush1.bf16.msra.mxu0 0
        %752 = vmatprep.subr.bf16.mxu0 0
        %753 = vmatpush1.bf16.msra.mxu0 0
        %754 = vmatprep.subr.bf16.mxu0 0
        %755 = vmatpush1.bf16.msra.mxu0 0
        %756 = vmatprep.subr.bf16.mxu0 0
        %757 = vmatpush1.bf16.msra.mxu0 0
        %758 = vmatprep.subr.bf16.mxu0 0
        %759 = vmatpush1.bf16.msra.mxu0 0
        %760 = vmatprep.subr.bf16.mxu0 0
        %761 = vmatpush1.bf16.msra.mxu0 0
        %762 = vmatprep.subr.bf16.mxu0 0
        %763 = vmatpush1.bf16.msra.mxu0 0
        %764 = vmatprep.mubr.bf16.mxu0 0
        %765 = vmatmul.mubr.bf16.gmra.mrb[0].mxu0 %v660
        %v766 = vpop.f32.mrb[0].mxu0
        %v767 = vadd.f32 %v682, %v766
        %v768 = vpop.f32.mrb[0].mxu0
        %v769 = vpop.f32.mrb[0].mxu0
        %v770 = vadd.f32 %v682, %v769
        %v771 = vpop.f32.mrb[0].mxu0
        %772 = vdwg.mxu0
        %v773 = vpack.c.bf16 %v770, %v767
        %v775 = vunpack.c.l.b16 %v773
        %v776 = vunpack.c.h.b16 %v773
        %v777 = vpack.c.b16 %v775, %v775
        %v778 = vpack.c.b16 %v776, %v776
        %781 = vst [vmem:[%s348] sm:$0xf] %v777
        %782 = vst [vmem:[%s348 + $0x4] sm:$0xf] %v778
        %s783 = sand.u32 %s186, 1
        %s784 = scalar_lea.sflag [#allocation4], %s783
        %s785 = sand.u32 %s186, 1
        %s786 = smul.addr %s785, 8
        %s787 = scalar_lea.vmem [#allocation10], %s786
        // Predicated region
        $region65: #{tpu_custom_call.1} parent=47 // pred_check
          %p788 = pneg %p196
        $region66: #{tpu_custom_call.1} parent=47 // pred_check_branch
          %790 = sbr.rel (%p788) target = $region68
        $region67: #{tpu_custom_call.1} parent=47 // pred_region
          %s791 = smul.u32 2, %s26
          %s792 = ssub.s32 3, %s791
          %p793 = scmp.lt.s32.totalorder %s792, 2
          %s794 = scalar_select %p793, %s792, 2
          %s795 = smul.u32 64, %s794
          %s797 = ssub.s32 128, %s795
          %798 = vsyncadd %s784, %s797
          %p799 = scmp.ne.s32.totalorder 0, %s795
          %s800 = smul.addr %s791, 64
          %s801 = scalar_lea.hbm %s7, %s800
          %s802 = smul.u32 4, %s794
          %s803 = sshll.u32 %s787, 4
          %s804 = int_to_ptr.vmem [resolvable:$true] %s803
          %s805 = sshll.u32 %s802, 4
          %809 = dma.vmem_to_hbm [thread:$0]  (%p799), %s804, %s805, %s801, %s784, 64, 64, 4
        $region68: #{tpu_custom_call.1} parent=47 // pred_fallthru
          _
      $region48: #{tpu_custom_call.1} parent=5 // pred_fallthru
        _
      %p810 = scmp.le.s32.totalorder 2, %s21
      // Predicated region
      $region69: #{tpu_custom_call.1} parent=5 // pred_check
        %p811 = pneg %p810
      $region70: #{tpu_custom_call.1} parent=5 // pred_check_branch
        %813 = sbr.rel (%p811) target = $region72
      $region71: #{tpu_custom_call.1} parent=5 // pred_region
        %s814 = ssub.s32 %s21, 2
        // Predicated region
        $region73: #{tpu_custom_call.1} parent=71 // pred_check
          %p815 = pneg %p202
        $region74: #{tpu_custom_call.1} parent=71 // pred_check_branch
          %817 = sbr.rel (%p815) target = $region76
        $region75: #{tpu_custom_call.1} parent=71 // pred_region
          %s818 = sand.u32 %s187, 1
          %s819 = scalar_lea.sflag [#allocation4], %s818
          %s820 = sand.u32 %s187, 1
          %s821 = smul.addr %s820, 8
          %s822 = scalar_lea.vmem [#allocation10], %s821
          %823 = dma.done %s819, 128
        $region76: #{tpu_custom_call.1} parent=71 // pred_fallthru
          _
      $region72: #{tpu_custom_call.1} parent=5 // pred_fallthru
        _
    $region6: #{tpu_custom_call.1} parent=1 // loop_footer
      %s25 = sadd.s32 1, %s21
    $region7: #{tpu_custom_call.1} parent=1 // loop_footer_branch
      %20 = sbr.rel target = $region3
    $region8: #{tpu_custom_call.1} parent=1 // loop_exit
      _
    %824 = vsyncpa [#allocation3], 1
    %s825 = scalar_lea.sflag [#allocation3], 1
    %826 = vsyncpa %s825, 1
    %827 = vsyncpa [#allocation6], 1
    %828 = vsyncpa [#allocation9], 1
    %829 = vsyncpa [#allocation4], 1
    %s830 = scalar_lea.sflag [#allocation4], 1
    %831 = vsyncpa %s830, 1

</llo_original>
